<compile_context>
chip_gen: v5e
topology: v5e:2x2
jax: 0.10.0
libtpu: 0.0.40
codegen_flags: <defaults>
</compile_context>

<pallas_src>
import functools

import numpy as np
import jax
import jax.numpy as jnp
from jax import lax
from jax.experimental import pallas as pl
from jax.experimental.pallas import tpu as pltpu


def _round_up(x, m):
    return (x + m - 1) // m * m


def _vmem_limit_bytes():
    """Generation-aware scoped-VMEM limit (leave ~1/4 headroom)."""
    cap = 64 * 1024 * 1024
    try:
        info = pltpu.get_tpu_info()
        cap = int(getattr(info, "vmem_capacity_bytes", cap))
    except Exception:
        pass
    return max(32 * 1024 * 1024, int(cap) * 3 // 4)


def _pick_time_chunk(t):
    """Largest chunk <= 256 that divides t (t is a multiple of 8)."""
    if t <= 256:
        return t
    best = 8
    for c in range(8, 257, 8):
        if t % c == 0:
            best = c
    return best


# ----------------------------------------------------------------------------
# Fused multi-layer GCN encoder, gridded over GROUPS of G graphs.
#   per group:  h <- relu(A_bd @ (h @ W_l) + b_l)   (no relu after last layer)
# A_bd is the block-diagonal adjacency of the G graphs (disjoint-batch
# structure), DMA'd into VMEM once and reused by every layer.  The feature
# transform is a single (G*Tp, Dp) x (Dp, Hp) MXU matmul per layer.
# ----------------------------------------------------------------------------
def gcn_encoder_kernel(*refs, n_layers, n_graphs, t_pad):
    # refs = (a_ref, x_ref, w_0..w_{L-1}, b_0..b_{L-1}, o_ref)
    a_ref, x_ref = refs[0], refs[1]
    w_refs = refs[2:2 + n_layers]
    b_refs = refs[2 + n_layers:2 + 2 * n_layers]
    o_ref = refs[2 + 2 * n_layers]

    n = n_graphs * t_pad
    a = a_ref[0]                                     # (N, N) bf16, resident for all layers
    h = x_ref[...].reshape(n, x_ref.shape[-1])       # (N, Dp) bf16
    for l in range(n_layers):
        xw = jnp.dot(h.astype(jnp.bfloat16), w_refs[l][...],
                     preferred_element_type=jnp.float32)               # X @ W  (MXU-filling)
        h = jnp.dot(a, xw.astype(jnp.bfloat16),
                    preferred_element_type=jnp.float32) + b_refs[l][...]  # A_bd @ XW + b
        if l < n_layers - 1:
            h = jnp.maximum(h, 0.0)                  # ReLU between layers, none after last
    o_ref[...] = h.reshape(n_graphs, t_pad, h.shape[-1]).astype(o_ref.dtype)


def gcn_encoder(a_bd, x_b, ws, bs, *, graphs_per_step):
    """a_bd: (n_groups, N, N) bf16 block-diag; x_b: (Bp, Tp, Dp) bf16;
    ws: bf16 [(Dp,Hp),(Hp,Hp),...]; bs: f32 [(1,Hp),...]."""
    n_groups, n_nodes, _ = a_bd.shape
    bp, tp, dp = x_b.shape
    hp = ws[-1].shape[1]
    g = graphs_per_step
    n_layers = len(ws)

    in_specs = [pl.BlockSpec((1, n_nodes, n_nodes), lambda i: (i, 0, 0)),
                pl.BlockSpec((g, tp, dp), lambda i: (i, 0, 0))]
    in_specs += [pl.BlockSpec(w.shape, lambda i: (0, 0)) for w in ws]
    in_specs += [pl.BlockSpec(b.shape, lambda i: (0, 0)) for b in bs]

    # TODO(synk): for a single very large graph (Tp >~ 2k), additionally
    # row-tile A (tm, Tp) with an inner grid axis so the resident adjacency
    # stays inside v7x's 64 MiB VMEM.
    return pl.pallas_call(
        functools.partial(gcn_encoder_kernel, n_layers=n_layers,
                          n_graphs=g, t_pad=tp),
        out_shape=jax.ShapeDtypeStruct((bp, tp, hp), jnp.bfloat16),
        grid=(n_groups,),
        in_specs=in_specs,
        out_specs=pl.BlockSpec((g, tp, hp), lambda i: (i, 0, 0)),
        compiler_params=pltpu.CompilerParams(
            dimension_semantics=("parallel",),   # v7x megacore; harmless elsewhere
            vmem_limit_bytes=_vmem_limit_bytes()),
    )(a_bd, x_b, *ws, *bs)


# ----------------------------------------------------------------------------
# Single-layer GRU, PyTorch gate order (r, z, n):
#   r = sig(gi_r + gh_r); z = sig(gi_z + gh_z); n = tanh(gi_n + r * gh_n)
#   h' = (1 - z) * n + z * h
# Gridded over time chunks; hidden state carried in a persistent VMEM scratch.
# Input projections hoisted into ONE matmul per chunk (stored bf16,
# time-major); hidden projection is one fused (Hp,3Hp) dot per step.
# ----------------------------------------------------------------------------
def gru_layer_kernel(x_ref, h0_ref, wiT_ref, whT_ref, bi_ref, bh_ref,
                     o_ref, h_ref, gi_ref, *, x_batch_major, unroll):
    # x_ref: (Bp,Tc,Hp) [batch-major] or (Tc,Bp,Hp) [time-major], bf16 or f32
    # h0_ref: (Bp,Hp) f32; wiT/whT: (Hp,3Hp) bf16 (gate order r|z|n, pre-transposed)
    # bi/bh: (1,3Hp) f32; o_ref: (Tc,Bp,Hp) f32 time-major
    # h_ref: persistent (Bp,Hp) f32 hidden-state carry; gi_ref: (Tc,Bp,3Hp) bf16
    tc, bp, hp = o_ref.shape
    hp3 = 3 * hp

    # Initialise the carried hidden state on the first time chunk only.
    @pl.when(pl.program_id(0) == 0)
    def _():
        h_ref[...] = h0_ref[...]

    # Hoisted input-side projections for the whole chunk: ONE MXU matmul.
    x_all = x_ref[...].reshape(tc * bp, hp).astype(jnp.bfloat16)
    gi = (jnp.dot(x_all, wiT_ref[...], preferred_element_type=jnp.float32)
          + bi_ref[...]).astype(jnp.bfloat16)
    if x_batch_major:
        # Stage batch-major gi into the time-major scratch (static strided stores),
        # replacing the XLA transpose that used to sit between encoder and decoder.
        gi_bm = gi.reshape(bp, tc, hp3)
        for b in range(bp):
            gi_ref[:, b, :] = gi_bm[b]
    else:
        gi_ref[...] = gi.reshape(tc, bp, hp3)

    # Hoisted weight / bias loads (reused every step).
    whT = whT_ref[...]
    bh = bh_ref[...]

    # TODO(synk): hold whT resident in MXU weight registers across steps via
    # pltpu.matmul_push_rhs / matmul_acc_lhs / matmul_pop (left as jnp.dot).
    def step(t, h):
        gi_t = gi_ref[t].astype(jnp.float32)                       # (Bp, 3Hp)
        gh = jnp.dot(h.astype(jnp.bfloat16), whT,
                     preferred_element_type=jnp.float32) + bh      # fused r|z|n
        r = jax.nn.sigmoid(gi_t[:, :hp] + gh[:, :hp])
        z = jax.nn.sigmoid(gi_t[:, hp:2 * hp] + gh[:, hp:2 * hp])
        n = jnp.tanh(gi_t[:, 2 * hp:] + r * gh[:, 2 * hp:])
        h_new = (1.0 - z) * n + z * h
        o_ref[t] = h_new.astype(o_ref.dtype)                       # lane-dense store
        return h_new

    h_ref[...] = lax.fori_loop(0, tc, step, h_ref[...], unroll=unroll)


def gru_layer(x, h0, wiT, whT, bi, bh, *, x_batch_major):
    if x_batch_major:
        bp, t, hp = x.shape
        x_spec = pl.BlockSpec((bp, _pick_time_chunk(t), hp), lambda c: (0, c, 0))
    else:
        t, bp, hp = x.shape
        x_spec = pl.BlockSpec((_pick_time_chunk(t), bp, hp), lambda c: (c, 0, 0))
    tc = _pick_time_chunk(t)
    n_chunks = t // tc

    # TODO(synk): on v7x (2 TensorCores), add a leading "parallel" grid axis
    # splitting batch rows across cores when Bp >= 16.
    return pl.pallas_call(
        functools.partial(gru_layer_kernel, x_batch_major=x_batch_major,
                          unroll=min(tc, 8)),
        out_shape=jax.ShapeDtypeStruct((t, bp, hp), jnp.float32),
        grid=(n_chunks,),
        in_specs=[x_spec,
                  pl.BlockSpec((bp, hp), lambda c: (0, 0)),
                  pl.BlockSpec(wiT.shape, lambda c: (0, 0)),
                  pl.BlockSpec(whT.shape, lambda c: (0, 0)),
                  pl.BlockSpec(bi.shape, lambda c: (0, 0)),
                  pl.BlockSpec(bh.shape, lambda c: (0, 0))],
        out_specs=pl.BlockSpec((tc, bp, hp), lambda c: (c, 0, 0)),
        scratch_shapes=[pltpu.VMEM((bp, hp), jnp.float32),          # carried hidden state
                        pltpu.VMEM((tc, bp, 3 * hp), jnp.bfloat16)],  # bf16 gi staging
        compiler_params=pltpu.CompilerParams(
            dimension_semantics=("arbitrary",),    # h carries across chunks
            vmem_limit_bytes=_vmem_limit_bytes()),
    )(x, h0, wiT, whT, bi, bh)


# ----------------------------------------------------------------------------
# Glue
# ----------------------------------------------------------------------------
def per_graph_norm_adj(edge_index, n, t_pad):
    """GCNConv-style D^{-1/2}(A+I)D^{-1/2} for one graph, zero-padded to t_pad.

    NOTE: duplicate edges collapse to weight 1 (scatter .set) and pre-existing
    self-loops would get +1 from the added eye — same edge-case semantics as a
    dense-adjacency GCN (documented, matches the previous version).
    """
    a = jnp.zeros((t_pad, t_pad), jnp.float32)
    a = a.at[edge_index[1], edge_index[0]].set(1.0)  # A[target, source]
    a = a + jnp.diag((jnp.arange(t_pad) < n).astype(jnp.float32))  # self loops on real nodes
    deg = a.sum(axis=1)
    dinv = jnp.where(deg > 0, lax.rsqrt(deg), 0.0)
    return a * dinv[:, None] * dinv[None, :]


def pack_gru_gates(w, b, h, hp):
    """torch (3H, H) gate-stacked weight -> lane-padded, pre-transposed (Hp, 3Hp) bf16."""
    wt = jnp.zeros((hp, 3 * hp), jnp.float32)
    bp = jnp.zeros((3 * hp,), jnp.float32)
    for g in range(3):
        wt = wt.at[:h, g * hp:g * hp + h].set(w[g * h:(g + 1) * h, :].T)
        bp = bp.at[g * hp:g * hp + h].set(b[g * h:(g + 1) * h])
    return wt.astype(jnp.bfloat16), bp.reshape(1, 3 * hp)


def addgraph_forward(xs, edge_indices, params, decoder_layers):
    B = len(xs)
    in_dim = int(xs[0].shape[1])
    hid_dim = int(params["gcn_w"][-1].shape[1])
    # h0 is the mean of the raw node features -> requires in_dim == hid_dim
    assert in_dim == hid_dim, "AddGraph_Base requires in_dim == hid_dim"
    assert decoder_layers >= 1

    n_list = [int(x.shape[0]) for x in xs]
    T = max(n_list)
    Tp = _round_up(T, 8)          # sublane-aligned padded graph size
    Dp = _round_up(in_dim, 128)   # lane-aligned feature dims
    Hp = _round_up(hid_dim, 128)

    # Graphs per GCN grid step: fill ~256 MXU rows with whole graphs.
    Bp = _round_up(B, 8)
    G = min(Bp, max(1, 256 // Tp))
    G = 1 << (G.bit_length() - 1)                 # power of two -> divides Bp
    Bp = _round_up(Bp, G)
    n_groups = Bp // G
    N = G * Tp

    # pad_sequence(batch_first=True); h0 = mean over the padded length T
    # (zeros included), exactly like the torch code.
    batched_x = jnp.stack([jnp.pad(x, ((0, T - x.shape[0]), (0, 0))) for x in xs])
    h0 = batched_x.mean(axis=1)                                             # (B, in_dim)

    x_b = (jnp.zeros((Bp, Tp, Dp), jnp.float32)
           .at[:B, :T, :in_dim].set(batched_x)).astype(jnp.bfloat16)        # (Bp,Tp,Dp)

    # Per-graph normalized adjacencies, grouped into block-diagonal tiles
    # (disjoint-batch structure) so each grid step runs lane-dense,
    # MXU-filling matmuls over G graphs at once.
    a_blocks = jnp.stack(
        [per_graph_norm_adj(edge_indices[i], n_list[i], Tp) for i in range(B)]
        + [jnp.zeros((Tp, Tp), jnp.float32)] * (Bp - B))                    # (Bp,Tp,Tp)
    eye_g = jnp.eye(G, dtype=jnp.float32)
    a_bd = (a_blocks.reshape(n_groups, G, Tp, Tp)[:, :, :, None, :]
            * eye_g[None, :, None, :, None]).reshape(n_groups, N, N)
    a_bd = a_bd.astype(jnp.bfloat16)                                        # (n_groups,N,N)

    # Lane-pad GCN weights (zero padding keeps real outputs exact).
    ws, bs = [], []
    dp_in = Dp
    for w, b in zip(params["gcn_w"], params["gcn_b"]):
        wp = jnp.zeros((dp_in, Hp), jnp.float32).at[:w.shape[0], :w.shape[1]].set(w)
        ws.append(wp.astype(jnp.bfloat16))
        bs.append(jnp.zeros((1, Hp), jnp.float32).at[0, :b.shape[0]].set(b))
        dp_in = Hp

    # Fused GCN encoder: bf16 batch-major output feeds the GRU directly
    # (no XLA transpose / f32 HBM round-trip of the intermediate).
    # TODO(synk): training-mode dropout between GCN layers omitted (eval semantics)
    h_gcn = gcn_encoder(a_bd, x_b, ws, bs, graphs_per_step=G)               # (Bp,Tp,Hp) bf16

    # GRU decoder. First layer consumes the encoder's batch-major bf16 output;
    # each layer emits time-major f32 which the next layer consumes directly.
    h0_p = jnp.zeros((Bp, Hp), jnp.float32).at[:B, :hid_dim].set(h0)
    seq = h_gcn
    batch_major = True
    for l in range(decoder_layers):
        wiT, bi = pack_gru_gates(params["gru_w_ih"][l], params["gru_b_ih"][l], hid_dim, Hp)
        whT, bh = pack_gru_gates(params["gru_w_hh"][l], params["gru_b_hh"][l], hid_dim, Hp)
        seq = gru_layer(seq, h0_p, wiT, whT, bi, bh, x_batch_major=batch_major)
        batch_major = False
        # TODO(synk): inter-layer GRU dropout omitted (eval semantics)

    # seq: (Tp, Bp, Hp) f32, time-major. Discard padded timesteps / lanes /
    # batch rows, like torch.cat([x_[i, :n_i]]).
    x_dense = jnp.concatenate([seq[:n_list[i], i, :hid_dim] for i in range(B)], axis=0)
    return x_dense


def init_params(key, in_dim, hid_dim, encoder_layers, decoder_layers):
    keys = iter(jax.random.split(key, 4 * encoder_layers + 4 * decoder_layers + 4))
    params = {"gcn_w": [], "gcn_b": [],
              "gru_w_ih": [], "gru_w_hh": [], "gru_b_ih": [], "gru_b_hh": []}
    d_in = in_dim
    for _ in range(encoder_layers):
        params["gcn_w"].append(0.1 * jax.random.normal(next(keys), (d_in, hid_dim), jnp.float32))
        params["gcn_b"].append(0.1 * jax.random.normal(next(keys), (hid_dim,), jnp.float32))
        d_in = hid_dim
    s = 1.0 / np.sqrt(hid_dim)
    for _ in range(decoder_layers):
        params["gru_w_ih"].append(
            jax.random.uniform(next(keys), (3 * hid_dim, hid_dim), jnp.float32, -s, s))
        params["gru_w_hh"].append(
            jax.random.uniform(next(keys), (3 * hid_dim, hid_dim), jnp.float32, -s, s))
        params["gru_b_ih"].append(
            jax.random.uniform(next(keys), (3 * hid_dim,), jnp.float32, -s, s))
        params["gru_b_hh"].append(
            jax.random.uniform(next(keys), (3 * hid_dim,), jnp.float32, -s, s))
    return params


def ring_edges(n):
    src = np.arange(n)
    dst = (src + 1) % n
    ei = np.stack([np.concatenate([src, dst]), np.concatenate([dst, src])])
    return jnp.asarray(ei, jnp.int32)


if __name__ == "__main__":
    in_dim = hid_dim = 32          # GRU h0 comes from raw features -> in_dim == hid_dim
    num_layers = 3
    decoder_layers = num_layers // 2               # 1
    encoder_layers = num_layers - decoder_layers   # 2

    key = jax.random.PRNGKey(0)
    kx0, kx1, kp = jax.random.split(key, 3)

    n_nodes = [6, 8]               # two small graphs in the batch
    xs = [jax.random.normal(kx0, (n_nodes[0], in_dim), jnp.float32),
          jax.random.normal(kx1, (n_nodes[1], in_dim), jnp.float32)]
    edge_indices = [ring_edges(n) for n in n_nodes]

    params = init_params(kp, in_dim, hid_dim, encoder_layers, decoder_layers)

    out = addgraph_forward(xs, edge_indices, params, decoder_layers)
    out = jax.block_until_ready(out)

    assert out.shape == (sum(n_nodes), hid_dim), out.shape
    assert out.dtype == jnp.float32
    assert bool(jnp.all(jnp.isfinite(out)))
    print("KERNEL_OK")
</pallas_src>

<mosaic_0001>
module attributes {stable_mosaic.version = 11 : i64} {
  func.func @gcn_encoder_kernel(%arg0: i32, %arg1: memref<1x64x64xbf16, #tpu.memory_space<vmem>>, %arg2: memref<8x8x128xbf16, #tpu.memory_space<vmem>>, %arg3: memref<128x128xbf16, #tpu.memory_space<vmem>>, %arg4: memref<128x128xbf16, #tpu.memory_space<vmem>>, %arg5: memref<1x128xf32, #tpu.memory_space<vmem>>, %arg6: memref<1x128xf32, #tpu.memory_space<vmem>>, %arg7: memref<8x8x128xbf16, #tpu.memory_space<vmem>>) attributes {dimension_semantics = [#tpu.dimension_semantics<parallel>], iteration_bounds = array<i64: 1>, scalar_prefetch = 0 : i64, scratch_operands = 0 : i64, tpu.core_type = #tpu.core_type<tc>, window_params = [{transform_indices = @transform_0, window_bounds = array<i64: 1, 64, 64>}, {transform_indices = @transform_1, window_bounds = array<i64: 8, 8, 128>}, {pipeline_mode = #tpu.pipeline_mode<synchronous>, transform_indices = @transform_2, window_bounds = array<i64: 128, 128>}, {pipeline_mode = #tpu.pipeline_mode<synchronous>, transform_indices = @transform_3, window_bounds = array<i64: 128, 128>}, {pipeline_mode = #tpu.pipeline_mode<synchronous>, transform_indices = @transform_4, window_bounds = array<i64: 1, 128>}, {pipeline_mode = #tpu.pipeline_mode<synchronous>, transform_indices = @transform_5, window_bounds = array<i64: 1, 128>}, {transform_indices = @transform_6, window_bounds = array<i64: 8, 8, 128>}]} {
    %c0 = arith.constant 0 : index
    %c0_0 = arith.constant 0 : index
    %c0_1 = arith.constant 0 : index
    %0 = vector.load %arg1[%c0, %c0_0, %c0_1] : memref<1x64x64xbf16, #tpu.memory_space<vmem>>, vector<1x64x64xbf16>
    %1 = vector.shape_cast %0 : vector<1x64x64xbf16> to vector<64x64xbf16>
    %c0_2 = arith.constant 0 : index
    %c0_3 = arith.constant 0 : index
    %c0_4 = arith.constant 0 : index
    %2 = vector.load %arg2[%c0_2, %c0_3, %c0_4] : memref<8x8x128xbf16, #tpu.memory_space<vmem>>, vector<8x8x128xbf16>
    %3 = vector.shape_cast %2 : vector<8x8x128xbf16> to vector<64x128xbf16>
    %c0_5 = arith.constant 0 : index
    %c0_6 = arith.constant 0 : index
    %4 = vector.load %arg3[%c0_5, %c0_6] : memref<128x128xbf16, #tpu.memory_space<vmem>>, vector<128x128xbf16>
    %cst = arith.constant dense<0.000000e+00> : vector<64x128xf32>
    %5 = tpu.matmul %3, %4, %cst {dimension_numbers = #tpu.dot_dimension_numbers<[1], [0], [0], [1], [0, 0, 1, 1], [], []>} : vector<64x128xbf16>, vector<128x128xbf16>, vector<64x128xf32> -> vector<64x128xf32>
    %6 = arith.truncf %5 : vector<64x128xf32> to vector<64x128xbf16>
    %cst_7 = arith.constant dense<0.000000e+00> : vector<64x128xf32>
    %7 = tpu.matmul %1, %6, %cst_7 {dimension_numbers = #tpu.dot_dimension_numbers<[1], [0], [0], [1], [0, 0, 1, 1], [], []>} : vector<64x64xbf16>, vector<64x128xbf16>, vector<64x128xf32> -> vector<64x128xf32>
    %c0_8 = arith.constant 0 : index
    %c0_9 = arith.constant 0 : index
    %8 = vector.load %arg5[%c0_8, %c0_9] : memref<1x128xf32, #tpu.memory_space<vmem>>, vector<1x128xf32>
    %9 = vector.broadcast %8 : vector<1x128xf32> to vector<64x128xf32>
    %10 = arith.addf %7, %9 : vector<64x128xf32>
    %cst_10 = arith.constant 0.000000e+00 : f32
    %11 = vector.broadcast %cst_10 : f32 to vector<64x128xf32>
    %12 = arith.maximumf %10, %11 : vector<64x128xf32>
    %13 = arith.truncf %12 : vector<64x128xf32> to vector<64x128xbf16>
    %c0_11 = arith.constant 0 : index
    %c0_12 = arith.constant 0 : index
    %14 = vector.load %arg4[%c0_11, %c0_12] : memref<128x128xbf16, #tpu.memory_space<vmem>>, vector<128x128xbf16>
    %cst_13 = arith.constant dense<0.000000e+00> : vector<64x128xf32>
    %15 = tpu.matmul %13, %14, %cst_13 {dimension_numbers = #tpu.dot_dimension_numbers<[1], [0], [0], [1], [0, 0, 1, 1], [], []>} : vector<64x128xbf16>, vector<128x128xbf16>, vector<64x128xf32> -> vector<64x128xf32>
    %16 = arith.truncf %15 : vector<64x128xf32> to vector<64x128xbf16>
    %cst_14 = arith.constant dense<0.000000e+00> : vector<64x128xf32>
    %17 = tpu.matmul %1, %16, %cst_14 {dimension_numbers = #tpu.dot_dimension_numbers<[1], [0], [0], [1], [0, 0, 1, 1], [], []>} : vector<64x64xbf16>, vector<64x128xbf16>, vector<64x128xf32> -> vector<64x128xf32>
    %c0_15 = arith.constant 0 : index
    %c0_16 = arith.constant 0 : index
    %18 = vector.load %arg6[%c0_15, %c0_16] : memref<1x128xf32, #tpu.memory_space<vmem>>, vector<1x128xf32>
    %19 = vector.broadcast %18 : vector<1x128xf32> to vector<64x128xf32>
    %20 = arith.addf %17, %19 : vector<64x128xf32>
    %21 = vector.shape_cast %20 : vector<64x128xf32> to vector<8x8x128xf32>
    %22 = arith.truncf %21 : vector<8x8x128xf32> to vector<8x8x128xbf16>
    %c0_17 = arith.constant 0 : index
    %c0_18 = arith.constant 0 : index
    %c0_19 = arith.constant 0 : index
    %23 = vector.load %arg7[%c0_17, %c0_18, %c0_19] : memref<8x8x128xbf16, #tpu.memory_space<vmem>>, vector<8x8x128xbf16>
    tpu.vector_store %arg7[%c0_17, %c0_18, %c0_19], %22 {strides = array<i32>} : memref<8x8x128xbf16, #tpu.memory_space<vmem>>, vector<8x8x128xbf16>,
    return
  }
  func.func @transform_0(%arg0: i32) -> (i32, i32, i32) {
    %c0_i32 = arith.constant 0 : i32
    %c0_i32_0 = arith.constant 0 : i32
    %c0_i32_1 = arith.constant 0 : i32
    return %arg0, %c0_i32, %c0_i32_0 : i32, i32, i32
  }
  func.func @transform_1(%arg0: i32) -> (i32, i32, i32) {
    %c0_i32 = arith.constant 0 : i32
    %c0_i32_0 = arith.constant 0 : i32
    %c0_i32_1 = arith.constant 0 : i32
    return %arg0, %c0_i32, %c0_i32_0 : i32, i32, i32
  }
  func.func @transform_2(%arg0: i32) -> (i32, i32) {
    %c0_i32 = arith.constant 0 : i32
    %c0_i32_0 = arith.constant 0 : i32
    %c0_i32_1 = arith.constant 0 : i32
    return %c0_i32, %c0_i32_0 : i32, i32
  }
  func.func @transform_3(%arg0: i32) -> (i32, i32) {
    %c0_i32 = arith.constant 0 : i32
    %c0_i32_0 = arith.constant 0 : i32
    %c0_i32_1 = arith.constant 0 : i32
    return %c0_i32, %c0_i32_0 : i32, i32
  }
  func.func @transform_4(%arg0: i32) -> (i32, i32) {
    %c0_i32 = arith.constant 0 : i32
    %c0_i32_0 = arith.constant 0 : i32
    %c0_i32_1 = arith.constant 0 : i32
    return %c0_i32, %c0_i32_0 : i32, i32
  }
  func.func @transform_5(%arg0: i32) -> (i32, i32) {
    %c0_i32 = arith.constant 0 : i32
    %c0_i32_0 = arith.constant 0 : i32
    %c0_i32_1 = arith.constant 0 : i32
    return %c0_i32, %c0_i32_0 : i32, i32
  }
  func.func @transform_6(%arg0: i32) -> (i32, i32, i32) {
    %c0_i32 = arith.constant 0 : i32
    %c0_i32_0 = arith.constant 0 : i32
    %c0_i32_1 = arith.constant 0 : i32
    return %arg0, %c0_i32, %c0_i32_0 : i32, i32, i32
  }
}

</mosaic_0001>

<llo_original>
// kernel: tpu_custom_call.1
$region0: #{tpu_custom_call.1}
  #allocation0 [shape = 'u32[]', space=smem, size = 0x4, offset = 0x4, fixed_abs, tag = 'smem constant byte address 0x4 - core index']
  #allocation1 [shape = 'u32[72,128]{1,0:T(1,128)}', space=vmem, size = 0x9000, scoped, tag = 'internal scratch']
  %s0 = inlined_call_operand.hbm [shape: bf16[1,64,64], index: 0, kind: input, shape index: {}]
  %s1 = inlined_call_operand.hbm [shape: bf16[8,8,128], index: 1, kind: input, shape index: {}]
  %s2 = inlined_call_operand.hbm [shape: bf16[128,128], index: 2, kind: input, shape index: {}]
  %s3 = inlined_call_operand.hbm [shape: bf16[128,128], index: 3, kind: input, shape index: {}]
  %s4 = inlined_call_operand.vmem [shape: f32[1,128], index: 4, kind: input, shape index: {}]
  %s5 = inlined_call_operand.vmem [shape: f32[1,128], index: 5, kind: input, shape index: {}]
  %s6 = inlined_call_operand.hbm [shape: bf16[8,8,128], index: 6, kind: output, shape index: {}]
  %s7 = sld [smem:[#allocation0]]
  $region50: #{tpu_custom_call.1} parent=0
    _
  %s9 = ssub.s32 1, %s7
  %s10 = scalar_select 0, %s9, %s7
  $region1: #{tpu_custom_call.1} parent=0
    #allocation2 [shape = 'u8[16384]{0}', space=vmem, size = 0x4000, scoped, tag = 'input window, operand 0, single buffered']
    #allocation3 [shape = 's32[1]{0}', space=sflag, size = 0x4, scoped, tag = 'scoped memory for tpu_custom_call.1']
    #allocation4 [shape = 's32[1]{0}', space=sflag, size = 0x4, scoped, tag = 'scoped memory for tpu_custom_call.1']
    #allocation5 [shape = 'u8[16384]{0}', space=vmem, size = 0x4000, scoped, tag = 'input window, operand 1, single buffered']
    #allocation6 [shape = 's32[1]{0}', space=sflag, size = 0x4, scoped, tag = 'scoped memory for tpu_custom_call.1']
    #allocation7 [shape = 'u8[32768]{0}', space=vmem, size = 0x8000, scoped, tag = 'input window, operand 2, single buffered']
    #allocation8 [shape = 'u8[32768]{0}', space=vmem, size = 0x8000, scoped, tag = 'input window, operand 3, single buffered']
    #allocation9 [shape = 's32[1]{0}', space=sflag, size = 0x4, scoped, tag = 'scoped memory for tpu_custom_call.1']
    #allocation10 [shape = 'u8[16384]{0}', space=vmem, size = 0x4000, scoped, tag = 'output window, operand 0, single buffered']
    %11 = vsyncpa [#allocation3], 0
    %12 = vsyncpa [#allocation6], 0
    %13 = vsyncpa [#allocation9], 0
    %14 = vsyncpa [#allocation4], 0
    // Predicated region
    $region2: #{tpu_custom_call.1} parent=1 // pred_check
      _
    $region3: #{tpu_custom_call.1} parent=1 // pred_check_branch
      %16 = sbr.rel (0) target = $region5
    $region4: #{tpu_custom_call.1} parent=1 // pred_region
      %18 = vsyncadd [#allocation3], 0
      %s19 = sshll.u32 %s0, 4
      %s20 = int_to_ptr.hbm [resolvable:$true] %s19
      %s21 = sshll.u32 [#allocation2], 4
      %s22 = int_to_ptr.vmem [resolvable:$true] %s21
      %27 = dma.hbm_to_vmem [thread:$0]  %s20, 512, %s22, [#allocation3], 64, 64, 4
    $region5: #{tpu_custom_call.1} parent=1 // pred_fallthru
      _
    // Predicated region
    $region6: #{tpu_custom_call.1} parent=1 // pred_check
      _
    $region7: #{tpu_custom_call.1} parent=1 // pred_check_branch
      %29 = sbr.rel (0) target = $region9
    $region8: #{tpu_custom_call.1} parent=1 // pred_region
      %31 = vsyncadd [#allocation6], 0
      %s32 = sshll.u32 %s1, 4
      %s33 = int_to_ptr.hbm [resolvable:$true] %s32
      %s34 = sshll.u32 [#allocation5], 4
      %s35 = int_to_ptr.vmem [resolvable:$true] %s34
      %40 = dma.hbm_to_vmem [thread:$0]  %s33, 512, %s35, [#allocation6], 64, 64, 4
    $region9: #{tpu_custom_call.1} parent=1 // pred_fallthru
      _
    // Predicated region
    $region10: #{tpu_custom_call.1} parent=1 // pred_check
      _
    $region11: #{tpu_custom_call.1} parent=1 // pred_check_branch
      %42 = sbr.rel (0) target = $region13
    $region12: #{tpu_custom_call.1} parent=1 // pred_region
      %44 = vsyncadd [#allocation6], 0
      %s45 = sshll.u32 %s2, 4
      %s46 = int_to_ptr.hbm [resolvable:$true] %s45
      %s47 = sshll.u32 [#allocation7], 4
      %s48 = int_to_ptr.vmem [resolvable:$true] %s47
      %53 = dma.hbm_to_vmem [thread:$0]  %s46, 1024, %s48, [#allocation6], 64, 64, 4
    $region13: #{tpu_custom_call.1} parent=1 // pred_fallthru
      _
    // Predicated region
    $region14: #{tpu_custom_call.1} parent=1 // pred_check
      _
    $region15: #{tpu_custom_call.1} parent=1 // pred_check_branch
      %55 = sbr.rel (0) target = $region17
    $region16: #{tpu_custom_call.1} parent=1 // pred_region
      %57 = vsyncadd [#allocation9], 0
      %s58 = sshll.u32 %s3, 4
      %s59 = int_to_ptr.hbm [resolvable:$true] %s58
      %s60 = sshll.u32 [#allocation8], 4
      %s61 = int_to_ptr.vmem [resolvable:$true] %s60
      %66 = dma.hbm_to_vmem [thread:$0]  %s59, 1024, %s61, [#allocation9], 64, 64, 4
    $region17: #{tpu_custom_call.1} parent=1 // pred_fallthru
      _
    // Predicated region
    $region18: #{tpu_custom_call.1} parent=1 // pred_check
      _
    $region19: #{tpu_custom_call.1} parent=1 // pred_check_branch
      %68 = sbr.rel (0) target = $region21
    $region20: #{tpu_custom_call.1} parent=1 // pred_region
      _
    $region21: #{tpu_custom_call.1} parent=1 // pred_fallthru
      _
    // Predicated region
    $region22: #{tpu_custom_call.1} parent=1 // pred_check
      _
    $region23: #{tpu_custom_call.1} parent=1 // pred_check_branch
      %70 = sbr.rel (0) target = $region25
    $region24: #{tpu_custom_call.1} parent=1 // pred_region
      _
    $region25: #{tpu_custom_call.1} parent=1 // pred_fallthru
      _
    // Predicated region
    $region26: #{tpu_custom_call.1} parent=1 // pred_check
      _
    $region27: #{tpu_custom_call.1} parent=1 // pred_check_branch
      %72 = sbr.rel (0) target = $region29
    $region28: #{tpu_custom_call.1} parent=1 // pred_region
      %74 = dma.done [#allocation3], 512
    $region29: #{tpu_custom_call.1} parent=1 // pred_fallthru
      _
    // Predicated region
    $region30: #{tpu_custom_call.1} parent=1 // pred_check
      _
    $region31: #{tpu_custom_call.1} parent=1 // pred_check_branch
      %76 = sbr.rel (0) target = $region33
    $region32: #{tpu_custom_call.1} parent=1 // pred_region
      %78 = dma.done [#allocation6], 512
    $region33: #{tpu_custom_call.1} parent=1 // pred_fallthru
      _
    // Predicated region
    $region34: #{tpu_custom_call.1} parent=1 // pred_check
      _
    $region35: #{tpu_custom_call.1} parent=1 // pred_check_branch
      %80 = sbr.rel (0) target = $region37
    $region36: #{tpu_custom_call.1} parent=1 // pred_region
      %82 = dma.done [#allocation6], 1024
    $region37: #{tpu_custom_call.1} parent=1 // pred_fallthru
      _
    // Predicated region
    $region38: #{tpu_custom_call.1} parent=1 // pred_check
      _
    $region39: #{tpu_custom_call.1} parent=1 // pred_check_branch
      %84 = sbr.rel (0) target = $region41
    $region40: #{tpu_custom_call.1} parent=1 // pred_region
      %86 = dma.done [#allocation9], 1024
    $region41: #{tpu_custom_call.1} parent=1 // pred_fallthru
      _
    %v88 = vld [vmem:[#allocation2] sm:$0xf]
    %v89 = vld [vmem:[#allocation2 + $0x4] sm:$0xf]
    %v90 = vld [vmem:[#allocation2 + $0x8] sm:$0xf]
    %v91 = vld [vmem:[#allocation2 + $0xc] sm:$0xf]
    %v92 = vld [vmem:[#allocation2 + $0x10] sm:$0xf]
    %v93 = vld [vmem:[#allocation2 + $0x14] sm:$0xf]
    %v94 = vld [vmem:[#allocation2 + $0x18] sm:$0xf]
    %v95 = vld [vmem:[#allocation2 + $0x1c] sm:$0xf]
    %v96 = vld [vmem:[#allocation5] sm:$0xf]
    %v97 = vld [vmem:[#allocation5 + $0x4] sm:$0xf]
    %v98 = vld [vmem:[#allocation5 + $0x8] sm:$0xf]
    %v99 = vld [vmem:[#allocation5 + $0xc] sm:$0xf]
    %v100 = vld [vmem:[#allocation5 + $0x10] sm:$0xf]
    %v101 = vld [vmem:[#allocation5 + $0x14] sm:$0xf]
    %v102 = vld [vmem:[#allocation5 + $0x18] sm:$0xf]
    %v103 = vld [vmem:[#allocation5 + $0x1c] sm:$0xf]
    %v104 = vld [vmem:[#allocation7] sm:$0xf]
    %v105 = vld [vmem:[#allocation7 + $0x4] sm:$0xf]
    %v106 = vld [vmem:[#allocation7 + $0x8] sm:$0xf]
    %v107 = vld [vmem:[#allocation7 + $0xc] sm:$0xf]
    %v108 = vld [vmem:[#allocation7 + $0x10] sm:$0xf]
    %v109 = vld [vmem:[#allocation7 + $0x14] sm:$0xf]
    %v110 = vld [vmem:[#allocation7 + $0x18] sm:$0xf]
    %v111 = vld [vmem:[#allocation7 + $0x1c] sm:$0xf]
    %v112 = vld [vmem:[#allocation7 + $0x20] sm:$0xf]
    %v113 = vld [vmem:[#allocation7 + $0x24] sm:$0xf]
    %v114 = vld [vmem:[#allocation7 + $0x28] sm:$0xf]
    %v115 = vld [vmem:[#allocation7 + $0x2c] sm:$0xf]
    %v116 = vld [vmem:[#allocation7 + $0x30] sm:$0xf]
    %v117 = vld [vmem:[#allocation7 + $0x34] sm:$0xf]
    %v118 = vld [vmem:[#allocation7 + $0x38] sm:$0xf]
    %v119 = vld [vmem:[#allocation7 + $0x3c] sm:$0xf]
    %v128 = vunpack.c.l.b16 %v96
    %v129 = vunpack.c.l.b16 %v97
    %v130 = vunpack.c.l.b16 %v98
    %v131 = vunpack.c.l.b16 %v99
    %v132 = vunpack.c.l.b16 %v100
    %v133 = vunpack.c.l.b16 %v101
    %v134 = vunpack.c.l.b16 %v102
    %v135 = vunpack.c.l.b16 %v103
    %v136 = vpack.c.b16 %v129, %v128
    %v137 = vpack.c.b16 %v131, %v130
    %v138 = vpack.c.b16 %v133, %v132
    %v139 = vpack.c.b16 %v135, %v134
    %v160 = vunpack.c.l.b16 %v104
    %v161 = vunpack.c.l.b16 %v105
    %v162 = vunpack.c.l.b16 %v106
    %v163 = vunpack.c.l.b16 %v107
    %v164 = vunpack.c.l.b16 %v108
    %v165 = vunpack.c.l.b16 %v109
    %v166 = vunpack.c.l.b16 %v110
    %v167 = vunpack.c.l.b16 %v111
    %v168 = vunpack.c.l.b16 %v112
    %v169 = vunpack.c.l.b16 %v113
    %v170 = vunpack.c.l.b16 %v114
    %v171 = vunpack.c.l.b16 %v115
    %v172 = vunpack.c.l.b16 %v116
    %v173 = vunpack.c.l.b16 %v117
    %v174 = vunpack.c.l.b16 %v118
    %v175 = vunpack.c.l.b16 %v119
    %v176 = vpack.c.b16 %v161, %v160
    %v177 = vpack.c.b16 %v163, %v162
    %v178 = vpack.c.b16 %v165, %v164
    %v179 = vpack.c.b16 %v167, %v166
    %v180 = vpack.c.b16 %v169, %v168
    %v181 = vpack.c.b16 %v171, %v170
    %v182 = vpack.c.b16 %v173, %v172
    %v183 = vpack.c.b16 %v175, %v174
    %192 = vmatpush.bf16.msra.mxu0 %v183
    %193 = vmatpush.bf16.msra.mxu0 %v182
    %194 = vmatpush.bf16.msra.mxu0 %v181
    %195 = vmatpush.bf16.msra.mxu0 %v180
    %196 = vmatpush.bf16.msra.mxu0 %v179
    %197 = vmatpush.bf16.msra.mxu0 %v178
    %198 = vmatpush.bf16.msra.mxu0 %v177
    %199 = vmatpush.bf16.msra.mxu0 %v176
    %200 = vmatmul.bf16.gmra.mxu0 %v136
    %v201 = vpop.f32.mrf.mxu0
    %v202 = vadd.f32 0.0, %v201
    %v203 = vpop.f32.mrf.mxu0
    %v204 = vadd.f32 0.0, %v203
    %205 = vmatmul.bf16.gmra.mxu0 %v137
    %v206 = vpop.f32.mrf.mxu0
    %v207 = vadd.f32 0.0, %v206
    %v208 = vpop.f32.mrf.mxu0
    %v209 = vadd.f32 0.0, %v208
    %210 = vmatmul.bf16.gmra.mxu0 %v138
    %v211 = vpop.f32.mrf.mxu0
    %v212 = vadd.f32 0.0, %v211
    %v213 = vpop.f32.mrf.mxu0
    %v214 = vadd.f32 0.0, %v213
    %215 = vmatmul.bf16.gmra.mxu0 %v139
    %v216 = vpop.f32.mrf.mxu0
    %v217 = vadd.f32 0.0, %v216
    %v218 = vpop.f32.mrf.mxu0
    %v219 = vadd.f32 0.0, %v218
    %220 = vdwg.mxu0
    %v221 = vpack.c.bf16 %v204, %v202
    %v222 = vpack.c.bf16 %v209, %v207
    %v223 = vpack.c.bf16 %v214, %v212
    %v224 = vpack.c.bf16 %v219, %v217
    %v225 = vld [vmem:[%s4] sm:$0x1]
    %v227 = vperm.slane %v225, 0
    %v237 = vunpack.c.l.b16 %v88
    %v238 = vunpack.c.l.b16 %v89
    %v239 = vunpack.c.l.b16 %v90
    %v240 = vunpack.c.l.b16 %v91
    %v241 = vunpack.c.l.b16 %v92
    %v242 = vunpack.c.l.b16 %v93
    %v243 = vunpack.c.l.b16 %v94
    %v244 = vunpack.c.l.b16 %v95
    %v245 = vpack.c.b16 %v238, %v237
    %v246 = vpack.c.b16 %v240, %v239
    %v247 = vpack.c.b16 %v242, %v241
    %v248 = vpack.c.b16 %v244, %v243
    %vm249 = vcmask 523264
    %v251 = vsel %vm249, %v245, 0
    %v254 = vsel %vm249, %v246, 0
    %v257 = vsel %vm249, %v247, 0
    %v260 = vsel %vm249, %v248, 0
    %262 = vmatpush.bf16.msra.mxu0 0
    %263 = vmatpush.bf16.msra.mxu0 0
    %264 = vmatpush.bf16.msra.mxu0 0
    %265 = vmatpush.bf16.msra.mxu0 0
    %266 = vmatpush.bf16.msra.mxu0 %v224
    %267 = vmatpush.bf16.msra.mxu0 %v223
    %268 = vmatpush.bf16.msra.mxu0 %v222
    %269 = vmatpush.bf16.msra.mxu0 %v221
    %270 = vmatmul.bf16.gmra.mxu0 %v251
    %v271 = vpop.f32.mrf.mxu0
    %v272 = vadd.f32 %v227, %v271
    %v273 = vpop.f32.mrf.mxu0
    %v274 = vadd.f32 %v227, %v273
    %275 = vmatmul.bf16.gmra.mxu0 %v254
    %v276 = vpop.f32.mrf.mxu0
    %v277 = vadd.f32 %v227, %v276
    %v278 = vpop.f32.mrf.mxu0
    %v279 = vadd.f32 %v227, %v278
    %280 = vmatmul.bf16.gmra.mxu0 %v257
    %v281 = vpop.f32.mrf.mxu0
    %v282 = vadd.f32 %v227, %v281
    %v283 = vpop.f32.mrf.mxu0
    %v284 = vadd.f32 %v227, %v283
    %285 = vmatmul.bf16.gmra.mxu0 %v260
    %v286 = vpop.f32.mrf.mxu0
    %v287 = vadd.f32 %v227, %v286
    %v288 = vpop.f32.mrf.mxu0
    %v289 = vadd.f32 %v227, %v288
    %290 = vdwg.mxu0
    %v291 = vmax.f32 %v272, 0.0
    %v292 = vmax.f32 %v274, 0.0
    %v293 = vmax.f32 %v277, 0.0
    %v294 = vmax.f32 %v279, 0.0
    %v295 = vmax.f32 %v282, 0.0
    %v296 = vmax.f32 %v284, 0.0
    %v297 = vmax.f32 %v287, 0.0
    %v298 = vmax.f32 %v289, 0.0
    %v299 = vpack.c.bf16 %v292, %v291
    %v300 = vpack.c.bf16 %v294, %v293
    %v301 = vpack.c.bf16 %v296, %v295
    %v302 = vpack.c.bf16 %v298, %v297
    %v303 = vld [vmem:[#allocation8] sm:$0xf]
    %v304 = vld [vmem:[#allocation8 + $0x4] sm:$0xf]
    %v305 = vld [vmem:[#allocation8 + $0x8] sm:$0xf]
    %v306 = vld [vmem:[#allocation8 + $0xc] sm:$0xf]
    %v307 = vld [vmem:[#allocation8 + $0x10] sm:$0xf]
    %v308 = vld [vmem:[#allocation8 + $0x14] sm:$0xf]
    %v309 = vld [vmem:[#allocation8 + $0x18] sm:$0xf]
    %v310 = vld [vmem:[#allocation8 + $0x1c] sm:$0xf]
    %v311 = vld [vmem:[#allocation8 + $0x20] sm:$0xf]
    %v312 = vld [vmem:[#allocation8 + $0x24] sm:$0xf]
    %v313 = vld [vmem:[#allocation8 + $0x28] sm:$0xf]
    %v314 = vld [vmem:[#allocation8 + $0x2c] sm:$0xf]
    %v315 = vld [vmem:[#allocation8 + $0x30] sm:$0xf]
    %v316 = vld [vmem:[#allocation8 + $0x34] sm:$0xf]
    %v317 = vld [vmem:[#allocation8 + $0x38] sm:$0xf]
    %v318 = vld [vmem:[#allocation8 + $0x3c] sm:$0xf]
    %v335 = vunpack.c.l.b16 %v303
    %v336 = vunpack.c.l.b16 %v304
    %v337 = vunpack.c.l.b16 %v305
    %v338 = vunpack.c.l.b16 %v306
    %v339 = vunpack.c.l.b16 %v307
    %v340 = vunpack.c.l.b16 %v308
    %v341 = vunpack.c.l.b16 %v309
    %v342 = vunpack.c.l.b16 %v310
    %v343 = vunpack.c.l.b16 %v311
    %v344 = vunpack.c.l.b16 %v312
    %v345 = vunpack.c.l.b16 %v313
    %v346 = vunpack.c.l.b16 %v314
    %v347 = vunpack.c.l.b16 %v315
    %v348 = vunpack.c.l.b16 %v316
    %v349 = vunpack.c.l.b16 %v317
    %v350 = vunpack.c.l.b16 %v318
    %v351 = vpack.c.b16 %v336, %v335
    %v352 = vpack.c.b16 %v338, %v337
    %v353 = vpack.c.b16 %v340, %v339
    %v354 = vpack.c.b16 %v342, %v341
    %v355 = vpack.c.b16 %v344, %v343
    %v356 = vpack.c.b16 %v346, %v345
    %v357 = vpack.c.b16 %v348, %v347
    %v358 = vpack.c.b16 %v350, %v349
    %367 = vmatpush.bf16.msra.mxu0 %v358
    %368 = vmatpush.bf16.msra.mxu0 %v357
    %369 = vmatpush.bf16.msra.mxu0 %v356
    %370 = vmatpush.bf16.msra.mxu0 %v355
    %371 = vmatpush.bf16.msra.mxu0 %v354
    %372 = vmatpush.bf16.msra.mxu0 %v353
    %373 = vmatpush.bf16.msra.mxu0 %v352
    %374 = vmatpush.bf16.msra.mxu0 %v351
    %375 = vmatmul.bf16.gmra.mxu0 %v299
    %v376 = vpop.f32.mrf.mxu0
    %v377 = vadd.f32 0.0, %v376
    %v378 = vpop.f32.mrf.mxu0
    %v379 = vadd.f32 0.0, %v378
    %380 = vmatmul.bf16.gmra.mxu0 %v300
    %v381 = vpop.f32.mrf.mxu0
    %v382 = vadd.f32 0.0, %v381
    %v383 = vpop.f32.mrf.mxu0
    %v384 = vadd.f32 0.0, %v383
    %385 = vmatmul.bf16.gmra.mxu0 %v301
    %v386 = vpop.f32.mrf.mxu0
    %v387 = vadd.f32 0.0, %v386
    %v388 = vpop.f32.mrf.mxu0
    %v389 = vadd.f32 0.0, %v388
    %390 = vmatmul.bf16.gmra.mxu0 %v302
    %v391 = vpop.f32.mrf.mxu0
    %v392 = vadd.f32 0.0, %v391
    %v393 = vpop.f32.mrf.mxu0
    %v394 = vadd.f32 0.0, %v393
    %395 = vdwg.mxu0
    %v396 = vpack.c.bf16 %v379, %v377
    %v397 = vpack.c.bf16 %v384, %v382
    %v398 = vpack.c.bf16 %v389, %v387
    %v399 = vpack.c.bf16 %v394, %v392
    %v400 = vld [vmem:[%s5] sm:$0x1]
    %v402 = vperm.slane %v400, 0
    %404 = vmatpush.bf16.msra.mxu0 0
    %405 = vmatpush.bf16.msra.mxu0 0
    %406 = vmatpush.bf16.msra.mxu0 0
    %407 = vmatpush.bf16.msra.mxu0 0
    %408 = vmatpush.bf16.msra.mxu0 %v399
    %409 = vmatpush.bf16.msra.mxu0 %v398
    %410 = vmatpush.bf16.msra.mxu0 %v397
    %411 = vmatpush.bf16.msra.mxu0 %v396
    %412 = vmatmul.bf16.gmra.mxu0 %v251
    %v413 = vpop.f32.mrf.mxu0
    %v414 = vadd.f32 %v402, %v413
    %v415 = vpop.f32.mrf.mxu0
    %v416 = vadd.f32 %v402, %v415
    %417 = vmatmul.bf16.gmra.mxu0 %v254
    %v418 = vpop.f32.mrf.mxu0
    %v419 = vadd.f32 %v402, %v418
    %v420 = vpop.f32.mrf.mxu0
    %v421 = vadd.f32 %v402, %v420
    %422 = vmatmul.bf16.gmra.mxu0 %v257
    %v423 = vpop.f32.mrf.mxu0
    %v424 = vadd.f32 %v402, %v423
    %v425 = vpop.f32.mrf.mxu0
    %v426 = vadd.f32 %v402, %v425
    %427 = vmatmul.bf16.gmra.mxu0 %v260
    %v428 = vpop.f32.mrf.mxu0
    %v429 = vadd.f32 %v402, %v428
    %v430 = vpop.f32.mrf.mxu0
    %v431 = vadd.f32 %v402, %v430
    %432 = vdwg.mxu0
    %v433 = vpack.c.bf16 %v414, %v414
    %v434 = vpack.c.bf16 %v416, %v416
    %v435 = vpack.c.bf16 %v419, %v419
    %v436 = vpack.c.bf16 %v421, %v421
    %v437 = vpack.c.bf16 %v424, %v424
    %v438 = vpack.c.bf16 %v426, %v426
    %v439 = vpack.c.bf16 %v429, %v429
    %v440 = vpack.c.bf16 %v431, %v431
    %441 = vst [vmem:[#allocation10] sm:$0xf] %v433
    %442 = vst [vmem:[#allocation10 + $0x4] sm:$0xf] %v434
    %443 = vst [vmem:[#allocation10 + $0x8] sm:$0xf] %v435
    %444 = vst [vmem:[#allocation10 + $0xc] sm:$0xf] %v436
    %445 = vst [vmem:[#allocation10 + $0x10] sm:$0xf] %v437
    %446 = vst [vmem:[#allocation10 + $0x14] sm:$0xf] %v438
    %447 = vst [vmem:[#allocation10 + $0x18] sm:$0xf] %v439
    %448 = vst [vmem:[#allocation10 + $0x1c] sm:$0xf] %v440
    // Predicated region
    $region42: #{tpu_custom_call.1} parent=1 // pred_check
      _
    $region43: #{tpu_custom_call.1} parent=1 // pred_check_branch
      %450 = sbr.rel (0) target = $region45
    $region44: #{tpu_custom_call.1} parent=1 // pred_region
      %452 = vsyncadd [#allocation4], 0
      %s453 = sshll.u32 [#allocation10], 4
      %s454 = int_to_ptr.vmem [resolvable:$true] %s453
      %s455 = sshll.u32 %s6, 4
      %s456 = int_to_ptr.hbm [resolvable:$true] %s455
      %461 = dma.vmem_to_hbm [thread:$0]  %s454, 512, %s456, [#allocation4], 64, 64, 4
    $region45: #{tpu_custom_call.1} parent=1 // pred_fallthru
      _
    // Predicated region
    $region46: #{tpu_custom_call.1} parent=1 // pred_check
      _
    $region47: #{tpu_custom_call.1} parent=1 // pred_check_branch
      %463 = sbr.rel (0) target = $region49
    $region48: #{tpu_custom_call.1} parent=1 // pred_region
      %465 = dma.done [#allocation4], 512
    $region49: #{tpu_custom_call.1} parent=1 // pred_fallthru
      _
    %466 = vsyncpa [#allocation3], 1
    %467 = vsyncpa [#allocation6], 1
    %468 = vsyncpa [#allocation9], 1
    %469 = vsyncpa [#allocation4], 1

</llo_original>
